<compile_context>
chip_gen: v7x
topology: tpu7x:2x2x1
jax: 0.10.0
libtpu: 0.0.40
codegen_flags: <defaults>
</compile_context>

<pallas_src>
import functools

import jax
import jax.numpy as jnp
from jax import lax
from jax.experimental import pallas as pl
from jax.experimental.pallas import tpu as pltpu

_LANE = 128


def _cdiv(a, b):
    return -(-a // b)


def _round_up(a, b):
    return _cdiv(a, b) * b


def _device_kind():
    try:
        return jax.devices()[0].device_kind.lower()
    except Exception:
        return ""


def _logl2_kernel(pred_ref, true_ref, out_ref, acc_ref, *, epsilon):
    """Accumulate sum((log(|pred|+eps) - log(|true|+eps))^2) over one tile.

    pred_ref / true_ref are (tile_rows, 128) blocks of the flattened
    (real, imag, real, imag, ...) inputs: even lanes hold the real part and
    odd lanes the imaginary part of the same complex element.  acc_ref is a
    single-vreg (8, 128) float32 running partial sum.
    """
    t = pl.program_id(1)

    @pl.when(t == 0)
    def _():
        acc_ref[...] = jnp.zeros_like(acc_ref)

    p = pred_ref[...].astype(jnp.float32)
    q = true_ref[...].astype(jnp.float32)
    p2 = p * p
    q2 = q * q

    # Pair real^2 + imag^2 with XLU lane rotations (jnp.roll semantics):
    #   shift=127 (== -1): lane i picks up lane i+1 -> |pred_k|^2 on even lane 2k
    #   shift=1          : lane i picks up lane i-1 -> |true_k|^2 on odd lane 2k+1
    p_m2 = p2 + pltpu.roll(p2, shift=_LANE - 1, axis=1)
    q_m2 = q2 + pltpu.roll(q2, shift=1, axis=1)

    # Even-lane mask built once at (1, 128); jnp.where broadcasts it over rows.
    lane = lax.broadcasted_iota(jnp.int32, (1, _LANE), 1)
    even = (lane & 1) == 0

    # Interleave so EVERY lane carries a valid squared magnitude:
    #   even lane 2k -> |pred_k|^2 ,  odd lane 2k+1 -> |true_k|^2.
    z = jnp.where(even, p_m2, q_m2)
    logmag = jnp.log(jnp.sqrt(z) + epsilon)

    # d at even lane 2k = log(|pred_k|+eps) - log(|true_k|+eps); odd lanes and
    # the lane-127 wraparound are discarded by the even-lane select below.
    d = logmag - pltpu.roll(logmag, shift=_LANE - 1, axis=1)
    dd = jnp.where(even, d * d, 0.0)

    # Single-vreg partial sum: layout-preserving reshape + VPU add tree.
    tile_rows = dd.shape[0]
    acc_ref[...] += jnp.sum(dd.reshape(tile_rows // 8, 8, _LANE), axis=0)

    @pl.when(t == pl.num_programs(1) - 1)
    def _():
        out_ref[0, 0] = jnp.sum(acc_ref[...])


def log_l2_loss(y_pred, y_true, epsilon, *, max_tile_rows=None, num_splits=None):
    """Pallas implementation of LogL2Loss.forward.

    y_pred, y_true: arrays whose last dimension is 2 (real, imag).
    Returns a scalar float32 loss.
    """
    assert y_pred.shape == y_true.shape
    assert y_pred.shape[-1] == 2

    n_complex = y_pred.size // 2       # mean denominator (true element count)
    flat_len = y_pred.size             # interleaved length (always even)

    kind = _device_kind()
    if num_splits is None:
        # The leading "parallel" axis only pays off on v7x (2 TensorCores).
        num_splits = 2 if ("v7" in kind or "tpu7" in kind) else 1
    if max_tile_rows is None:
        # 8192 rows = 4 MiB f32 per input block (16 MiB double-buffered),
        # inside the 32 MiB scoped-VMEM default on v6e/v7x; 4096 on v5e.
        big = ("v6" in kind) or ("v7" in kind) or ("tpu7" in kind)
        max_tile_rows = 8192 if big else 4096
    num_splits = max(1, int(num_splits))

    # Sublane packing of the narrowest input dtype (8 f32 / 16 bf16 / 32 i8).
    pack = max(max(8, 32 // jnp.dtype(a.dtype).itemsize)
               for a in (y_pred, y_true))

    # Free contiguous reshapes; inputs stay in their native dtype (cast to
    # f32 happens per-tile inside the kernel).
    flat_p = y_pred.reshape(-1)
    flat_t = y_true.reshape(-1)
    rem = flat_len % _LANE
    if rem:
        # TODO(synk): rare fallback — pad to the next 128 boundary so the
        # (rows, 128) view stays a reshape; this copies both inputs once.
        flat_p = jnp.pad(flat_p, (0, _LANE - rem))
        flat_t = jnp.pad(flat_t, (0, _LANE - rem))
    rows = (flat_len + (_LANE - rem) % _LANE) // _LANE

    p2d = flat_p.reshape(rows, _LANE)
    t2d = flat_t.reshape(rows, _LANE)

    # Largest pack-aligned tile that fits max_tile_rows, one per-split share,
    # and the row count, so the grid only touches full, fully-valid tiles.
    share = _round_up(_cdiv(rows, num_splits), pack)
    tile_rows = min(max_tile_rows, share, max(pack, (rows // pack) * pack))
    tile_rows = max(pack, (tile_rows // pack) * pack)

    tiles_total = rows // tile_rows
    if tiles_total < num_splits:
        num_splits = 1
    tiles_per_split = tiles_total // num_splits
    covered_rows = tiles_per_split * num_splits * tile_rows

    total = jnp.float32(0.0)

    if tiles_per_split > 0:
        in_spec = pl.BlockSpec(
            (tile_rows, _LANE), lambda s, t: (s * tiles_per_split + t, 0))
        out_spec = pl.BlockSpec((1, 1), lambda s, t: (s, 0),
                                memory_space=pltpu.MemorySpace.SMEM)
        bytes_per = (jnp.dtype(y_pred.dtype).itemsize
                     + jnp.dtype(y_true.dtype).itemsize)
        cost = pl.CostEstimate(
            flops=10 * covered_rows * _LANE,
            transcendentals=covered_rows * _LANE,
            bytes_accessed=covered_rows * _LANE * bytes_per)

        partials = pl.pallas_call(
            functools.partial(_logl2_kernel, epsilon=float(epsilon)),
            out_shape=jax.ShapeDtypeStruct((num_splits, 1), jnp.float32),
            grid_spec=pltpu.PrefetchScalarGridSpec(
                num_scalar_prefetch=0,
                grid=(num_splits, tiles_per_split),
                in_specs=[in_spec, in_spec],
                out_specs=out_spec,
                scratch_shapes=[pltpu.VMEM((8, _LANE), jnp.float32)],
            ),
            compiler_params=pltpu.CompilerParams(
                dimension_semantics=("parallel", "arbitrary")),
            cost_estimate=cost,
        )(p2d, t2d)
        total = total + jnp.sum(partials)

    if covered_rows < rows:
        # Ragged tail (< num_splits*tile_rows rows): tiny, reduced with plain
        # jnp; any zero-padded lanes contribute log(eps)-log(eps) == 0.
        tp = flat_p[covered_rows * _LANE:].astype(jnp.float32).reshape(-1, 2)
        tt = flat_t[covered_rows * _LANE:].astype(jnp.float32).reshape(-1, 2)
        lp = jnp.log(jnp.sqrt(tp[:, 0] ** 2 + tp[:, 1] ** 2) + epsilon)
        lt = jnp.log(jnp.sqrt(tt[:, 0] ** 2 + tt[:, 1] ** 2) + epsilon)
        total = total + jnp.sum((lp - lt) ** 2)

    return total / jnp.float32(n_complex)


def _reference_log_l2_loss(y_pred, y_true, epsilon):
    def cabs(x):
        x = x.astype(jnp.float32)
        return jnp.sqrt(x[..., 0] ** 2 + x[..., 1] ** 2)

    lp = jnp.log(cabs(y_pred) + epsilon)
    lt = jnp.log(cabs(y_true) + epsilon)
    return jnp.mean((lp - lt) ** 2)


if __name__ == "__main__":
    epsilon = 1e-6
    key = jax.random.PRNGKey(0)
    k1, k2, k3, k4, k5, k6 = jax.random.split(key, 6)

    # Case 1: small fastMRI-style complex batch (B, H, W, 2); single tile.
    shape1 = (2, 16, 16, 2)
    yp1 = jax.random.normal(k1, shape1, dtype=jnp.float32)
    yt1 = jax.random.normal(k2, shape1, dtype=jnp.float32)
    out1 = jax.block_until_ready(log_l2_loss(yp1, yt1, epsilon))
    ref1 = _reference_log_l2_loss(yp1, yt1, epsilon)
    assert jnp.allclose(out1, ref1, rtol=1e-4, atol=1e-6), (out1, ref1)

    # Case 2: forces a (2, 4)-step grid with a small tile plus a ragged row
    # tail, exercising multi-step accumulation and the jnp remainder path.
    shape2 = (2, 48, 100, 2)
    yp2 = jax.random.normal(k3, shape2, dtype=jnp.float32)
    yt2 = jax.random.normal(k4, shape2, dtype=jnp.float32)
    out2 = jax.block_until_ready(
        log_l2_loss(yp2, yt2, epsilon, max_tile_rows=16, num_splits=2))
    ref2 = _reference_log_l2_loss(yp2, yt2, epsilon)
    assert jnp.allclose(out2, ref2, rtol=1e-4, atol=1e-6), (out2, ref2)

    # Case 3: numel not a multiple of 128 -> exercises the rare pad fallback.
    shape3 = (2, 9, 50, 2)
    yp3 = jax.random.normal(k5, shape3, dtype=jnp.float32)
    yt3 = jax.random.normal(k6, shape3, dtype=jnp.float32)
    out3 = jax.block_until_ready(log_l2_loss(yp3, yt3, epsilon))
    ref3 = _reference_log_l2_loss(yp3, yt3, epsilon)
    assert jnp.allclose(out3, ref3, rtol=1e-4, atol=1e-6), (out3, ref3)

    print("KERNEL_OK")
</pallas_src>

<mosaic_0001>
module attributes {stable_mosaic.version = 11 : i64} {
  func.func @_logl2_kernel(%arg0: i32, %arg1: i32, %arg2: memref<8x128xf32, #tpu.memory_space<vmem>>, %arg3: memref<8x128xf32, #tpu.memory_space<vmem>>, %arg4: memref<1x1xf32, #tpu.memory_space<smem>>, %arg5: memref<8x128xf32, #tpu.memory_space<vmem>>) attributes {dimension_semantics = [#tpu.dimension_semantics<parallel>, #tpu.dimension_semantics<arbitrary>], iteration_bounds = array<i64: 1, 1>, scalar_prefetch = 0 : i64, scratch_operands = 1 : i64, tpu.core_type = #tpu.core_type<tc>, window_params = [{transform_indices = @transform_0, window_bounds = array<i64: 8, 128>}, {transform_indices = @transform_1, window_bounds = array<i64: 8, 128>}, {transform_indices = @transform_2, window_bounds = array<i64: 1, 1>}]} {
    %c0_i32 = arith.constant 0 : i32
    %0 = arith.cmpi eq, %arg1, %c0_i32 : i32
    %1 = arith.extui %0 : i1 to i32
    %c0_i32_0 = arith.constant 0 : i32
    %2 = arith.cmpi ne, %1, %c0_i32_0 : i32
    scf.if %2 {
      %cst_15 = arith.constant 0.000000e+00 : f32
      %38 = vector.broadcast %cst_15 : f32 to vector<8x128xf32>
      %c0_16 = arith.constant 0 : index
      %c0_17 = arith.constant 0 : index
      %39 = vector.load %arg5[%c0_16, %c0_17] : memref<8x128xf32, #tpu.memory_space<vmem>>, vector<8x128xf32>
      tpu.vector_store %arg5[%c0_16, %c0_17], %38 {strides = array<i32>} : memref<8x128xf32, #tpu.memory_space<vmem>>, vector<8x128xf32>,
    } else {
    }
    %c0 = arith.constant 0 : index
    %c0_1 = arith.constant 0 : index
    %3 = vector.load %arg2[%c0, %c0_1] : memref<8x128xf32, #tpu.memory_space<vmem>>, vector<8x128xf32>
    %c0_2 = arith.constant 0 : index
    %c0_3 = arith.constant 0 : index
    %4 = vector.load %arg3[%c0_2, %c0_3] : memref<8x128xf32, #tpu.memory_space<vmem>>, vector<8x128xf32>
    %5 = arith.mulf %3, %3 : vector<8x128xf32>
    %6 = arith.mulf %4, %4 : vector<8x128xf32>
    %c127_i32 = arith.constant 127 : i32
    %7 = tpu.dynamic_rotate %5 by %c127_i32 dim 1 : vector<8x128xf32>, i32 -> vector<8x128xf32>
    %8 = arith.addf %5, %7 : vector<8x128xf32>
    %c1_i32 = arith.constant 1 : i32
    %9 = tpu.dynamic_rotate %6 by %c1_i32 dim 1 : vector<8x128xf32>, i32 -> vector<8x128xf32>
    %10 = arith.addf %6, %9 : vector<8x128xf32>
    %11 = tpu.iota {dimensions = array<i32: 1>} : vector<1x128xi32>
    %c1_i32_4 = arith.constant 1 : i32
    %12 = vector.broadcast %c1_i32_4 : i32 to vector<1x128xi32>
    %13 = arith.andi %11, %12 : vector<1x128xi32>
    %c0_i32_5 = arith.constant 0 : i32
    %14 = vector.broadcast %c0_i32_5 : i32 to vector<1x128xi32>
    %15 = arith.cmpi eq, %13, %14 : vector<1x128xi32>
    %16 = vector.shape_cast %15 : vector<1x128xi1> to vector<1x128xi1>
    %17 = vector.broadcast %16 : vector<1x128xi1> to vector<8x128xi1>
    %18 = arith.select %17, %8, %10 : vector<8x128xi1>, vector<8x128xf32>
    %19 = math.sqrt %18 : vector<8x128xf32>
    %cst = arith.constant 9.99999997E-7 : f32
    %20 = vector.broadcast %cst : f32 to vector<8x128xf32>
    %21 = arith.addf %19, %20 : vector<8x128xf32>
    %22 = math.log %21 : vector<8x128xf32>
    %c127_i32_6 = arith.constant 127 : i32
    %23 = tpu.dynamic_rotate %22 by %c127_i32_6 dim 1 : vector<8x128xf32>, i32 -> vector<8x128xf32>
    %24 = arith.subf %22, %23 : vector<8x128xf32>
    %25 = arith.mulf %24, %24 : vector<8x128xf32>
    %cst_7 = arith.constant 0.000000e+00 : f32
    %26 = vector.shape_cast %15 : vector<1x128xi1> to vector<1x128xi1>
    %27 = vector.broadcast %26 : vector<1x128xi1> to vector<8x128xi1>
    %28 = vector.broadcast %cst_7 : f32 to vector<8x128xf32>
    %29 = arith.select %27, %25, %28 : vector<8x128xi1>, vector<8x128xf32>
    %c0_8 = arith.constant 0 : index
    %c0_9 = arith.constant 0 : index
    %30 = vector.load %arg5[%c0_8, %c0_9] : memref<8x128xf32, #tpu.memory_space<vmem>>, vector<8x128xf32>
    %31 = vector.shape_cast %29 : vector<8x128xf32> to vector<1x8x128xf32>
    %cst_10 = arith.constant dense<0.000000e+00> : vector<8x128xf32>
    %32 = vector.multi_reduction <add>, %31, %cst_10 [0] : vector<1x8x128xf32> to vector<8x128xf32>
    %33 = arith.addf %30, %32 : vector<8x128xf32>
    %c0_11 = arith.constant 0 : index
    %c0_12 = arith.constant 0 : index
    %34 = vector.load %arg5[%c0_11, %c0_12] : memref<8x128xf32, #tpu.memory_space<vmem>>, vector<8x128xf32>
    tpu.vector_store %arg5[%c0_11, %c0_12], %33 {strides = array<i32>} : memref<8x128xf32, #tpu.memory_space<vmem>>, vector<8x128xf32>,
    %c0_i32_13 = arith.constant 0 : i32
    %35 = arith.cmpi eq, %arg1, %c0_i32_13 : i32
    %36 = arith.extui %35 : i1 to i32
    %c0_i32_14 = arith.constant 0 : i32
    %37 = arith.cmpi ne, %36, %c0_i32_14 : i32
    scf.if %37 {
      %c0_15 = arith.constant 0 : index
      %c0_16 = arith.constant 0 : index
      %38 = vector.load %arg5[%c0_15, %c0_16] : memref<8x128xf32, #tpu.memory_space<vmem>>, vector<8x128xf32>
      %39 = vector.shape_cast %38 : vector<8x128xf32> to vector<1x8x128xf32>
      %cst_17 = arith.constant dense<0.000000e+00> : vector<1xf32>
      %40 = vector.multi_reduction <add>, %39, %cst_17 [1, 2] : vector<1x8x128xf32> to vector<1xf32>
      %41 = vector.shape_cast %40 : vector<1xf32> to vector<1x1x1xf32>
      %42 = vector.extract %41[0, 0, 0] : f32 from vector<1x1x1xf32>
      %c0_18 = arith.constant 0 : index
      %c0_19 = arith.constant 0 : index
      %43 = memref.load %arg4[%c0_18, %c0_19] : memref<1x1xf32, #tpu.memory_space<smem>>
      memref.store %42, %arg4[%c0_18, %c0_19] : memref<1x1xf32, #tpu.memory_space<smem>>
    } else {
    }
    return
  }
  func.func @transform_0(%arg0: i32, %arg1: i32) -> (i32, i32) {
    %c1_i32 = arith.constant 1 : i32
    %0 = arith.muli %arg0, %c1_i32 : i32
    %1 = arith.addi %0, %arg1 : i32
    %c0_i32 = arith.constant 0 : i32
    %c0_i32_0 = arith.constant 0 : i32
    return %1, %c0_i32 : i32, i32
  }
  func.func @transform_1(%arg0: i32, %arg1: i32) -> (i32, i32) {
    %c1_i32 = arith.constant 1 : i32
    %0 = arith.muli %arg0, %c1_i32 : i32
    %1 = arith.addi %0, %arg1 : i32
    %c0_i32 = arith.constant 0 : i32
    %c0_i32_0 = arith.constant 0 : i32
    return %1, %c0_i32 : i32, i32
  }
  func.func @transform_2(%arg0: i32, %arg1: i32) -> (i32, i32) {
    %c0_i32 = arith.constant 0 : i32
    %c0_i32_0 = arith.constant 0 : i32
    return %arg0, %c0_i32 : i32, i32
  }
}

</mosaic_0001>

<llo_original>
// kernel: tpu_custom_call.1
$region0: #{tpu_custom_call.1}
  #allocation0 [shape = 'u32[]', space=smem, size = 0x4, offset = 0x4, fixed_abs, tag = 'smem constant byte address 0x4 - core index']
  #allocation1 [shape = 'u32[144,128]{1,0:T(1,128)}', space=vmem, size = 0x12000, scoped, tag = 'internal scratch']
  #allocation2 [shape = 'f32[8,128]{1,0:T(8,128)}', space=vmem, size = 0x1000, scoped, tag = 'scratch operand']
  %s0 = inlined_call_operand.hbm [shape: f32[8,128], index: 0, kind: input, shape index: {}]
  %s1 = inlined_call_operand.hbm [shape: f32[8,128], index: 1, kind: input, shape index: {}]
  %s2 = inlined_call_operand.hbm [shape: f32[1,1], index: 2, kind: output, shape index: {}]
  %s3 = sld [smem:[#allocation0]]
  $region34: #{tpu_custom_call.1} parent=0
    _
  %s5 = ssub.s32 1, %s3
  %s6 = scalar_select 0, %s5, %s3
  $region1: #{tpu_custom_call.1} parent=0
    #allocation3 [shape = 'u8[4096]{0}', space=vmem, size = 0x1000, scoped, tag = 'input window, operand 0, single buffered']
    #allocation4 [shape = 's32[1]{0}', space=sflag, size = 0x4, scoped, tag = 'scoped memory for tpu_custom_call.1']
    #allocation5 [shape = 's32[1]{0}', space=sflag, size = 0x4, scoped, tag = 'scoped memory for tpu_custom_call.1']
    #allocation6 [shape = 'u8[4096]{0}', space=vmem, size = 0x1000, scoped, tag = 'input window, operand 1, single buffered']
    #allocation7 [shape = 's32[1]{0}', space=sflag, size = 0x4, scoped, tag = 'scoped memory for tpu_custom_call.1']
    #allocation8 [shape = 'u8[512]{0}', space=smem, size = 0x200, scoped, tag = 'output window, operand 0, single buffered']
    %7 = vsyncpa [#allocation4], 0
    %8 = vsyncpa [#allocation7], 0
    %9 = vsyncpa [#allocation5], 0
    // Predicated region
    $region2: #{tpu_custom_call.1} parent=1 // pred_check
      _
    $region3: #{tpu_custom_call.1} parent=1 // pred_check_branch
      %11 = sbr.rel (0) target = $region5
    $region4: #{tpu_custom_call.1} parent=1 // pred_region
      %s12 = sadd.s32 0, 0
      %s14 = ssub.s32 128, 128
      %15 = vsyncadd [#allocation4], %s14
      %s16 = smul.addr %s12, 128
      %s17 = scalar_lea.hbm %s0, %s16
      %s19 = sshll.u32 [#allocation3], 4
      %s20 = int_to_ptr.vmem [resolvable:$true] %s19
      %22 = dma.hbm_to_vmem [thread:$0]  %s17, 128, %s20, [#allocation4]
    $region5: #{tpu_custom_call.1} parent=1 // pred_fallthru
      _
    // Predicated region
    $region6: #{tpu_custom_call.1} parent=1 // pred_check
      _
    $region7: #{tpu_custom_call.1} parent=1 // pred_check_branch
      %24 = sbr.rel (0) target = $region9
    $region8: #{tpu_custom_call.1} parent=1 // pred_region
      %s25 = sadd.s32 0, 0
      %s27 = ssub.s32 128, 128
      %28 = vsyncadd [#allocation7], %s27
      %s29 = smul.addr %s25, 128
      %s30 = scalar_lea.hbm %s1, %s29
      %s32 = sshll.u32 [#allocation6], 4
      %s33 = int_to_ptr.vmem [resolvable:$true] %s32
      %35 = dma.hbm_to_vmem [thread:$0]  %s30, 128, %s33, [#allocation7]
    $region9: #{tpu_custom_call.1} parent=1 // pred_fallthru
      _
    // Predicated region
    $region10: #{tpu_custom_call.1} parent=1 // pred_check
      _
    $region11: #{tpu_custom_call.1} parent=1 // pred_check_branch
      %37 = sbr.rel (0) target = $region13
    $region12: #{tpu_custom_call.1} parent=1 // pred_region
      %38 = dma.done [#allocation4], 128
    $region13: #{tpu_custom_call.1} parent=1 // pred_fallthru
      _
    // Predicated region
    $region14: #{tpu_custom_call.1} parent=1 // pred_check
      _
    $region15: #{tpu_custom_call.1} parent=1 // pred_check_branch
      %40 = sbr.rel (0) target = $region17
    $region16: #{tpu_custom_call.1} parent=1 // pred_region
      %41 = dma.done [#allocation7], 128
    $region17: #{tpu_custom_call.1} parent=1 // pred_fallthru
      _
    %s42 = sadd.s32 0, 0
    %s43 = sadd.s32 0, 0
    %p44 = scmp.eq.s32.totalorder 0, 0
    // Predicated region
    $region18: #{tpu_custom_call.1} parent=1 // pred_check
      %p45 = pneg %p44
    $region19: #{tpu_custom_call.1} parent=1 // pred_check_branch
      %47 = sbr.rel (%p45) target = $region21
    $region20: #{tpu_custom_call.1} parent=1 // pred_region
      %48 = vst [vmem:[#allocation2] sm:$0xff] 0.0
    $region21: #{tpu_custom_call.1} parent=1 // pred_fallthru
      _
    %v49 = vld [vmem:[#allocation3] sm:$0xff]
    %v50 = vld [vmem:[#allocation6] sm:$0xff]
    %v51 = vmul.f32 %v49, %v49
    %v52 = vmul.f32 %v50, %v50
    %53 = vrot.lane.b32.xlu0 %v51, 127
    %v54 = vpop.permute.xlu0 %53
    %v55 = vadd.f32 %v51, %v54
    %56 = vrot.lane.b32.xlu0 %v52, 1
    %v57 = vpop.permute.xlu0 %56
    %v58 = vadd.f32 %v52, %v57
    %v59 = vlaneseq
    %v60 = vand.u32 %v59, 127
    %v61 = vand.u32 %v60, 1
    %vm62 = vcmp.eq.s32.totalorder %v61, 0
    %v63 = vsel %vm62, 1, 0
    %vm64 = vcmp.eq.s32.totalorder %v63, 1
    %v65 = vsel %vm64, %v55, %v58
    %v66 = vrsqrt.pop %v65
    %v67 = vmul.f32 %v65, %v66
    %vm68 = vcmp.eq.f32.partialorder %v65, inf
    %v69 = vsel %vm68, %v65, %v67
    %vm70 = vcmp.eq.f32.partialorder %v65, 0.0
    %v71 = vand.u32 %v65, 2147483648
    %v72 = vsel %vm70, %v71, %v69
    %v73 = vadd.f32 %v72, 1e-06
    %v74 = vlog2.pop %v73
    %v75 = vmul.f32 %v74, 0.6931472
    %76 = vrot.lane.b32.xlu0 %v75, 127
    %v77 = vpop.permute.xlu0 %76
    %v78 = vsub.f32 %v75, %v77
    %v79 = vmul.f32 %v78, %v78
    %v80 = vsel %vm64, %v79, 0.0
    %v81 = vld [vmem:[#allocation2] sm:$0xff]
    %v82 = vadd.f32 %v80, 0.0
    %v83 = vadd.f32 %v81, %v82
    %84 = vst [vmem:[#allocation2] sm:$0xff] %v83
    // Predicated region
    $region22: #{tpu_custom_call.1} parent=1 // pred_check
      %p85 = pneg %p44
    $region23: #{tpu_custom_call.1} parent=1 // pred_check_branch
      %87 = sbr.rel (%p85) target = $region25
    $region24: #{tpu_custom_call.1} parent=1 // pred_region
      %v88 = vld [vmem:[#allocation2] sm:$0xff]
      %89 = vadd.xlane.f32.xlu0 %v88
      %v90 = vpop.xlane.xlu0 %89
      %v91 = vrot.slane %v90, 4
      %v92 = vadd.f32 %v90, %v91
      %v93 = vrot.slane %v92, 2
      %v94 = vadd.f32 %v92, %v93
      %v95 = vrot.slane %v94, 1
      %v96 = vadd.f32 %v94, %v95
      %s97 = vtos %v96
      %s98 = scalar_lea.smem [#allocation8], 0
      %99 = sst [smem:[%s98]] %s97
    $region25: #{tpu_custom_call.1} parent=1 // pred_fallthru
      _
    // Predicated region
    $region26: #{tpu_custom_call.1} parent=1 // pred_check
      _
    $region27: #{tpu_custom_call.1} parent=1 // pred_check_branch
      %101 = sbr.rel (0) target = $region29
    $region28: #{tpu_custom_call.1} parent=1 // pred_region
      %s103 = ssub.s32 16, 16
      %104 = vsyncadd [#allocation5], %s103
      %107 = dma.smem_to_hbm [#allocation8], 16, %s2, [#allocation5]
    $region29: #{tpu_custom_call.1} parent=1 // pred_fallthru
      _
    // Predicated region
    $region30: #{tpu_custom_call.1} parent=1 // pred_check
      _
    $region31: #{tpu_custom_call.1} parent=1 // pred_check_branch
      %109 = sbr.rel (0) target = $region33
    $region32: #{tpu_custom_call.1} parent=1 // pred_region
      %110 = dma.done [#allocation5], 16
    $region33: #{tpu_custom_call.1} parent=1 // pred_fallthru
      _
    %111 = sfence
    %112 = vsyncpa [#allocation4], 1
    %113 = vsyncpa [#allocation7], 1
    %114 = vsyncpa [#allocation5], 1

</llo_original>
